<compile_context>
chip_gen: v5e
topology: v5e:2x2
jax: 0.10.0
libtpu: 0.0.40
codegen_flags: <defaults>
</compile_context>

<pallas_src>
import functools

import jax
import jax.numpy as jnp
from jax import lax
from jax.experimental import pallas as pl
from jax.experimental.pallas import tpu as pltpu


def _hm_lstm_kernel(w_ref, b_ref, x_ref, zzb_ref, out_ref, *,
                    hidden_size, bottom_size, top_size, a):
    H = hidden_size
    ot = bottom_size               # start of the h_top block in x
    oh = bottom_size + top_size    # start of the h block
    oc = oh + H                    # start of the c block

    x = x_ref[...]                 # (B, Kpad): [h_bottom | h_top | h | c]
    z = zzb_ref[:, 0:1]            # (B, 1)
    zb = zzb_ref[:, 1:2]           # (B, 1)

    # Column-scale the packed input so a single matmul realises
    #   W_01 @ h_bottom + z * (U_21 @ h_top) + z_bottom * (U_11 @ h).
    # Columns >= oh (the h and c blocks) get z_bottom; the weight rows for the
    # c block are zero, so its scaling is irrelevant to the dot.
    col = lax.broadcasted_iota(jnp.int32, x.shape, 1)
    scale = jnp.where(col < ot, jnp.float32(1.0), jnp.where(col < oh, z, zb))
    xs = x * scale

    # One fused MXU push: (B, Kpad) @ (Kpad, Npad) -> (B, Npad).
    f_s = jnp.dot(xs, w_ref[...], preferred_element_type=jnp.float32) + b_ref[...]

    # Columns [0, 4H) are the gates (one clean 128-lane tile for H=32);
    # column 4H is the boundary-detector (z_hat) row.
    f = jax.nn.sigmoid(f_s[:, 0:H])
    i = jax.nn.sigmoid(f_s[:, H:2 * H])
    o = jax.nn.sigmoid(f_s[:, 2 * H:3 * H])
    g = jnp.tanh(f_s[:, 3 * H:4 * H])
    # hard_sigm(a, x) = clamp((a*x + 1) / 2, 0, 1)
    z_hat = jnp.clip((f_s[:, 4 * H:4 * H + 1] * a + 1.0) * 0.5, 0.0, 1.0)

    h_prev = x[:, oh:oh + H]       # unscaled h
    c_prev = x[:, oc:oc + H]       # unscaled c

    one = jnp.float32(1.0)
    ig = i * g
    keep = (one - z) * (one - zb)  # (B, 1) -> broadcasts over H columns
    upd = (one - z) * zb
    c_new = z * ig + keep * c_prev + upd * (f * c_prev + ig)
    tanh_c = jnp.tanh(c_new)
    h_new = z * o * tanh_c + keep * h_prev + upd * o * tanh_c

    # bound(): forward is a hard threshold at 0.5 (straight-through in bwd).
    z_new = (z_hat > 0.5).astype(jnp.float32)

    out_ref[:, 0:H] = h_new
    out_ref[:, H:2 * H] = c_new
    out_ref[:, 2 * H:2 * H + 1] = z_new


class HMLSTMCellPallas:
    """JAX/Pallas re-implementation of the HM_LSTMCell forward pass."""

    def __init__(self, bottom_size, hidden_size, top_size, a, last_layer, key):
        self.bottom_size = bottom_size
        self.hidden_size = hidden_size
        self.top_size = top_size
        self.a = float(a)
        self.last_layer = last_layer

        H = hidden_size
        rows = 4 * H + 1
        stdv = 1.0 / (H ** 0.5)
        k1, k2, k3, k4 = jax.random.split(key, 4)
        self.U_11 = jax.random.uniform(k1, (rows, H), minval=-stdv,
                                       maxval=stdv, dtype=jnp.float32)
        if not last_layer:
            self.U_21 = jax.random.uniform(k2, (rows, top_size), minval=-stdv,
                                           maxval=stdv, dtype=jnp.float32)
        else:
            # Last layer has no top-down connection; a zero block makes the
            # fused kernel compute exactly s_topdown = 0.
            self.U_21 = jnp.zeros((rows, top_size), dtype=jnp.float32)
        self.W_01 = jax.random.uniform(k3, (rows, bottom_size), minval=-stdv,
                                       maxval=stdv, dtype=jnp.float32)
        self.bias = jax.random.uniform(k4, (rows,), minval=-stdv,
                                       maxval=stdv, dtype=jnp.float32)

        # Fused, transposed weight packed ONCE:
        #   rows   : [W_01 | U_21 | U_11] blocks, then H zero rows matching the
        #            c block packed into the kernel input (contributes nothing).
        #   columns: 4H gate columns + 1 z_hat column, zero-padded to a
        #            multiple of 128 lanes.
        K = bottom_size + top_size + H
        self._Kpad = K + H
        self._Npad = ((rows + 127) // 128) * 128
        w_t = jnp.concatenate([self.W_01, self.U_21, self.U_11], axis=1).T  # (K, rows)
        self.W_packed = (jnp.zeros((self._Kpad, self._Npad), jnp.float32)
                         .at[:K, :rows].set(w_t))
        self.b_packed = (jnp.zeros((1, self._Npad), jnp.float32)
                         .at[0, :rows].set(self.bias))

    def __call__(self, c, h_bottom, h, h_top, z, z_bottom):
        """Inputs/outputs in the module's (features, batch) layout."""
        H = self.hidden_size
        B = c.shape[1]

        # Consolidated, lane-dense kernel inputs (batch-major).
        x = jnp.concatenate([h_bottom.T, h_top.T, h.T, c.T],
                            axis=1).astype(jnp.float32)        # (B, Kpad)
        zzb = jnp.concatenate([z.T, z_bottom.T],
                              axis=1).astype(jnp.float32)      # (B, 2)

        kernel = functools.partial(_hm_lstm_kernel,
                                   hidden_size=H,
                                   bottom_size=self.bottom_size,
                                   top_size=self.top_size,
                                   a=self.a)
        vmem = pl.BlockSpec(memory_space=pltpu.MemorySpace.VMEM)

        out = pl.pallas_call(
            kernel,
            out_shape=jax.ShapeDtypeStruct((B, 2 * H + 1), jnp.float32),
            in_specs=[vmem, vmem, vmem, vmem],
            out_specs=vmem,
        )(self.W_packed, self.b_packed, x, zzb)

        h_new = out[:, 0:H].T
        c_new = out[:, H:2 * H].T
        z_new = out[:, 2 * H:2 * H + 1].T
        return h_new, c_new, z_new

    # Pure-JAX reference (original, unfused formulation) for correctness.
    def reference(self, c, h_bottom, h, h_top, z, z_bottom):
        H = self.hidden_size
        s_recur = self.W_01 @ h_bottom
        s_topdown = z * (self.U_21 @ h_top)          # zero block if last_layer
        s_bottomup = z_bottom * (self.U_11 @ h)
        f_s = s_recur + s_topdown + s_bottomup + self.bias[:, None]
        f = jax.nn.sigmoid(f_s[0:H, :])
        i = jax.nn.sigmoid(f_s[H:2 * H, :])
        o = jax.nn.sigmoid(f_s[2 * H:3 * H, :])
        g = jnp.tanh(f_s[3 * H:4 * H, :])
        z_hat = jnp.clip((f_s[4 * H:4 * H + 1, :] * self.a + 1.0) / 2.0, 0.0, 1.0)
        ig = i * g
        c_new = (z * ig + (1 - z) * (1 - z_bottom) * c
                 + (1 - z) * z_bottom * (f * c + ig))
        tc = jnp.tanh(c_new)
        h_new = (z * o * tc + (1 - z) * (1 - z_bottom) * h
                 + (1 - z) * z_bottom * o * tc)
        z_new = (z_hat > 0.5).astype(jnp.float32)
        return h_new, c_new, z_new


if __name__ == "__main__":
    bottom_size, hidden_size, top_size = 32, 32, 32
    batch = 8
    a = 1.0

    key = jax.random.PRNGKey(0)
    kp, kc, khb, kh, kht, kz, kzb = jax.random.split(key, 7)

    cell = HMLSTMCellPallas(bottom_size, hidden_size, top_size, a,
                            last_layer=False, key=kp)

    c = jax.random.normal(kc, (hidden_size, batch), dtype=jnp.float32)
    h_bottom = jax.random.normal(khb, (bottom_size, batch), dtype=jnp.float32)
    h = jax.random.normal(kh, (hidden_size, batch), dtype=jnp.float32)
    h_top = jax.random.normal(kht, (top_size, batch), dtype=jnp.float32)
    # z / z_bottom are boundary indicators in {0, 1}, shape (1, B).
    z = (jax.random.uniform(kz, (1, batch)) > 0.5).astype(jnp.float32)
    z_bottom = (jax.random.uniform(kzb, (1, batch)) > 0.5).astype(jnp.float32)

    h_new, c_new, z_new = cell(c, h_bottom, h, h_top, z, z_bottom)
    jax.block_until_ready((h_new, c_new, z_new))

    h_ref, c_ref, z_ref = cell.reference(c, h_bottom, h, h_top, z, z_bottom)
    assert h_new.shape == (hidden_size, batch)
    assert c_new.shape == (hidden_size, batch)
    assert z_new.shape == (1, batch)
    assert jnp.allclose(h_new, h_ref, atol=1e-5, rtol=1e-5)
    assert jnp.allclose(c_new, c_ref, atol=1e-5, rtol=1e-5)
    assert jnp.allclose(z_new, z_ref)

    print("KERNEL_OK")
</pallas_src>

<mosaic_0001>
module attributes {stable_mosaic.version = 11 : i64} {
  func.func @_hm_lstm_kernel(%arg0: memref<128x256xf32, #tpu.memory_space<vmem>>, %arg1: memref<1x256xf32, #tpu.memory_space<vmem>>, %arg2: memref<8x128xf32, #tpu.memory_space<vmem>>, %arg3: memref<8x2xf32, #tpu.memory_space<vmem>>, %arg4: memref<8x65xf32, #tpu.memory_space<vmem>>) attributes {dimension_semantics = [], scalar_prefetch = 0 : i64, scratch_operands = 0 : i64, tpu.core_type = #tpu.core_type<tc>} {
    %c0 = arith.constant 0 : index
    %c0_0 = arith.constant 0 : index
    %0 = vector.load %arg2[%c0, %c0_0] : memref<8x128xf32, #tpu.memory_space<vmem>>, vector<8x128xf32>
    %c0_1 = arith.constant 0 : index
    %c0_2 = arith.constant 0 : index
    %1 = vector.load %arg3[%c0_1, %c0_2] : memref<8x2xf32, #tpu.memory_space<vmem>>, vector<8x1xf32>
    %c0_3 = arith.constant 0 : index
    %c1 = arith.constant 1 : index
    %2 = vector.load %arg3[%c0_3, %c1] : memref<8x2xf32, #tpu.memory_space<vmem>>, vector<8x1xf32>
    %3 = tpu.iota {dimensions = array<i32: 1>} : vector<8x128xi32>
    %c32_i32 = arith.constant 32 : i32
    %4 = vector.broadcast %c32_i32 : i32 to vector<8x128xi32>
    %5 = arith.cmpi slt, %3, %4 : vector<8x128xi32>
    %c64_i32 = arith.constant 64 : i32
    %6 = vector.broadcast %c64_i32 : i32 to vector<8x128xi32>
    %7 = arith.cmpi slt, %3, %6 : vector<8x128xi32>
    %8 = vector.shape_cast %1 : vector<8x1xf32> to vector<8x1xf32>
    %9 = vector.broadcast %8 : vector<8x1xf32> to vector<8x128xf32>
    %10 = vector.shape_cast %2 : vector<8x1xf32> to vector<8x1xf32>
    %11 = vector.broadcast %10 : vector<8x1xf32> to vector<8x128xf32>
    %12 = arith.select %7, %9, %11 : vector<8x128xi1>, vector<8x128xf32>
    %cst = arith.constant 1.000000e+00 : f32
    %13 = vector.broadcast %cst : f32 to vector<8x128xf32>
    %14 = arith.select %5, %13, %12 : vector<8x128xi1>, vector<8x128xf32>
    %15 = arith.mulf %0, %14 : vector<8x128xf32>
    %c0_4 = arith.constant 0 : index
    %c0_5 = arith.constant 0 : index
    %16 = vector.load %arg0[%c0_4, %c0_5] : memref<128x256xf32, #tpu.memory_space<vmem>>, vector<128x256xf32>
    %cst_6 = arith.constant dense<0.000000e+00> : vector<8x256xf32>
    %17 = tpu.matmul %15, %16, %cst_6 {dimension_numbers = #tpu.dot_dimension_numbers<[1], [0], [0], [1], [0, 0, 1, 1], [], []>} : vector<8x128xf32>, vector<128x256xf32>, vector<8x256xf32> -> vector<8x256xf32>
    %c0_7 = arith.constant 0 : index
    %c0_8 = arith.constant 0 : index
    %18 = vector.load %arg1[%c0_7, %c0_8] : memref<1x256xf32, #tpu.memory_space<vmem>>, vector<1x256xf32>
    %19 = vector.broadcast %18 : vector<1x256xf32> to vector<8x256xf32>
    %20 = arith.addf %17, %19 : vector<8x256xf32>
    %21 = vector.extract_strided_slice %20 {offsets = [0, 0], sizes = [8, 32], strides = [1, 1]} : vector<8x256xf32> to vector<8x32xf32>
    %22 = arith.negf %21 : vector<8x32xf32>
    %23 = math.exp %22 : vector<8x32xf32>
    %cst_9 = arith.constant 1.000000e+00 : f32
    %24 = vector.broadcast %cst_9 : f32 to vector<8x32xf32>
    %25 = arith.addf %24, %23 : vector<8x32xf32>
    %26 = arith.divf %24, %25 : vector<8x32xf32>
    %27 = vector.extract_strided_slice %20 {offsets = [0, 32], sizes = [8, 32], strides = [1, 1]} : vector<8x256xf32> to vector<8x32xf32>
    %28 = arith.negf %27 : vector<8x32xf32>
    %29 = math.exp %28 : vector<8x32xf32>
    %cst_10 = arith.constant 1.000000e+00 : f32
    %30 = vector.broadcast %cst_10 : f32 to vector<8x32xf32>
    %31 = arith.addf %30, %29 : vector<8x32xf32>
    %32 = arith.divf %30, %31 : vector<8x32xf32>
    %33 = vector.extract_strided_slice %20 {offsets = [0, 64], sizes = [8, 32], strides = [1, 1]} : vector<8x256xf32> to vector<8x32xf32>
    %34 = arith.negf %33 : vector<8x32xf32>
    %35 = math.exp %34 : vector<8x32xf32>
    %cst_11 = arith.constant 1.000000e+00 : f32
    %36 = vector.broadcast %cst_11 : f32 to vector<8x32xf32>
    %37 = arith.addf %36, %35 : vector<8x32xf32>
    %38 = arith.divf %36, %37 : vector<8x32xf32>
    %39 = vector.extract_strided_slice %20 {offsets = [0, 96], sizes = [8, 32], strides = [1, 1]} : vector<8x256xf32> to vector<8x32xf32>
    %40 = math.tanh %39 : vector<8x32xf32>
    %41 = vector.extract_strided_slice %20 {offsets = [0, 128], sizes = [8, 1], strides = [1, 1]} : vector<8x256xf32> to vector<8x1xf32>
    %cst_12 = arith.constant 1.000000e+00 : f32
    %42 = vector.broadcast %cst_12 : f32 to vector<8x1xf32>
    %43 = arith.mulf %41, %42 : vector<8x1xf32>
    %cst_13 = arith.constant 1.000000e+00 : f32
    %44 = vector.broadcast %cst_13 : f32 to vector<8x1xf32>
    %45 = arith.addf %43, %44 : vector<8x1xf32>
    %cst_14 = arith.constant 5.000000e-01 : f32
    %46 = vector.broadcast %cst_14 : f32 to vector<8x1xf32>
    %47 = arith.mulf %45, %46 : vector<8x1xf32>
    %cst_15 = arith.constant 0.000000e+00 : f32
    %cst_16 = arith.constant 1.000000e+00 : f32
    %48 = vector.broadcast %cst_15 : f32 to vector<8x1xf32>
    %49 = arith.maximumf %48, %47 : vector<8x1xf32>
    %50 = vector.broadcast %cst_16 : f32 to vector<8x1xf32>
    %51 = arith.minimumf %50, %49 : vector<8x1xf32>
    %52 = vector.extract_strided_slice %0 {offsets = [0, 64], sizes = [8, 32], strides = [1, 1]} : vector<8x128xf32> to vector<8x32xf32>
    %53 = vector.extract_strided_slice %0 {offsets = [0, 96], sizes = [8, 32], strides = [1, 1]} : vector<8x128xf32> to vector<8x32xf32>
    %54 = arith.mulf %32, %40 : vector<8x32xf32>
    %cst_17 = arith.constant 1.000000e+00 : f32
    %55 = vector.broadcast %cst_17 : f32 to vector<8x1xf32>
    %56 = arith.subf %55, %1 : vector<8x1xf32>
    %cst_18 = arith.constant 1.000000e+00 : f32
    %57 = vector.broadcast %cst_18 : f32 to vector<8x1xf32>
    %58 = arith.subf %57, %2 : vector<8x1xf32>
    %59 = arith.mulf %56, %58 : vector<8x1xf32>
    %cst_19 = arith.constant 1.000000e+00 : f32
    %60 = vector.broadcast %cst_19 : f32 to vector<8x1xf32>
    %61 = arith.subf %60, %1 : vector<8x1xf32>
    %62 = arith.mulf %61, %2 : vector<8x1xf32>
    %63 = vector.broadcast %1 : vector<8x1xf32> to vector<8x32xf32>
    %64 = arith.mulf %63, %54 : vector<8x32xf32>
    %65 = vector.broadcast %59 : vector<8x1xf32> to vector<8x32xf32>
    %66 = arith.mulf %65, %53 : vector<8x32xf32>
    %67 = arith.addf %64, %66 : vector<8x32xf32>
    %68 = arith.mulf %26, %53 : vector<8x32xf32>
    %69 = arith.addf %68, %54 : vector<8x32xf32>
    %70 = vector.broadcast %62 : vector<8x1xf32> to vector<8x32xf32>
    %71 = arith.mulf %70, %69 : vector<8x32xf32>
    %72 = arith.addf %67, %71 : vector<8x32xf32>
    %73 = math.tanh %72 : vector<8x32xf32>
    %74 = vector.broadcast %1 : vector<8x1xf32> to vector<8x32xf32>
    %75 = arith.mulf %74, %38 : vector<8x32xf32>
    %76 = arith.mulf %75, %73 : vector<8x32xf32>
    %77 = vector.broadcast %59 : vector<8x1xf32> to vector<8x32xf32>
    %78 = arith.mulf %77, %52 : vector<8x32xf32>
    %79 = arith.addf %76, %78 : vector<8x32xf32>
    %80 = vector.broadcast %62 : vector<8x1xf32> to vector<8x32xf32>
    %81 = arith.mulf %80, %38 : vector<8x32xf32>
    %82 = arith.mulf %81, %73 : vector<8x32xf32>
    %83 = arith.addf %79, %82 : vector<8x32xf32>
    %cst_20 = arith.constant 5.000000e-01 : f32
    %84 = vector.broadcast %cst_20 : f32 to vector<8x1xf32>
    %85 = arith.cmpf ogt, %51, %84 : vector<8x1xf32>
    %86 = arith.extui %85 : vector<8x1xi1> to vector<8x1xi32>
    %87 = arith.sitofp %86 : vector<8x1xi32> to vector<8x1xf32>
    %c0_21 = arith.constant 0 : index
    %c0_22 = arith.constant 0 : index
    %88 = vector.load %arg4[%c0_21, %c0_22] : memref<8x65xf32, #tpu.memory_space<vmem>>, vector<8x32xf32>
    tpu.vector_store %arg4[%c0_21, %c0_22], %83 {strides = array<i32>} : memref<8x65xf32, #tpu.memory_space<vmem>>, vector<8x32xf32>,
    %c0_23 = arith.constant 0 : index
    %c32 = arith.constant 32 : index
    %89 = vector.load %arg4[%c0_23, %c32] : memref<8x65xf32, #tpu.memory_space<vmem>>, vector<8x32xf32>
    tpu.vector_store %arg4[%c0_23, %c32], %72 {strides = array<i32>} : memref<8x65xf32, #tpu.memory_space<vmem>>, vector<8x32xf32>,
    %c0_24 = arith.constant 0 : index
    %c64 = arith.constant 64 : index
    %90 = vector.load %arg4[%c0_24, %c64] : memref<8x65xf32, #tpu.memory_space<vmem>>, vector<8x1xf32>
    tpu.vector_store %arg4[%c0_24, %c64], %87 {strides = array<i32>} : memref<8x65xf32, #tpu.memory_space<vmem>>, vector<8x1xf32>,
    return
  }
}

</mosaic_0001>

<llo_original>
// kernel: tpu_custom_call.1
$region0: #{tpu_custom_call.1}
  #allocation0 [shape = 'u32[]', space=smem, size = 0x4, offset = 0x4, fixed_abs, tag = 'smem constant byte address 0x4 - core index']
  #allocation1 [shape = 'u32[72,128]{1,0:T(1,128)}', space=vmem, size = 0x9000, scoped, tag = 'internal scratch']
  %s0 = inlined_call_operand.hbm [shape: f32[128,256], index: 0, kind: input, shape index: {}]
  %s1 = inlined_call_operand.vmem [shape: f32[1,256], index: 1, kind: input, shape index: {}]
  %s2 = inlined_call_operand.vmem [shape: f32[8,128], index: 2, kind: input, shape index: {}]
  %s3 = inlined_call_operand.vmem [shape: f32[8,2], index: 3, kind: input, shape index: {}]
  %s4 = inlined_call_operand.hbm [shape: f32[8,65], index: 4, kind: output, shape index: {}]
  %s5 = sld [smem:[#allocation0]]
  $region30: #{tpu_custom_call.1} parent=0
    _
  %s7 = ssub.s32 1, %s5
  %s8 = scalar_select 0, %s7, %s5
  $region1: #{tpu_custom_call.1} parent=0
    #allocation2 [shape = 'u8[131072]{0}', space=vmem, size = 0x20000, scoped, tag = 'input window, operand 0, single buffered']
    #allocation3 [shape = 's32[1]{0}', space=sflag, size = 0x4, scoped, tag = 'scoped memory for tpu_custom_call.1']
    #allocation4 [shape = 's32[1]{0}', space=sflag, size = 0x4, scoped, tag = 'scoped memory for tpu_custom_call.1']
    #allocation5 [shape = 'u8[4096]{0}', space=vmem, size = 0x1000, scoped, tag = 'output window, operand 0, single buffered']
    %9 = vsyncpa [#allocation3], 0
    %10 = vsyncpa [#allocation4], 0
    // Predicated region
    $region2: #{tpu_custom_call.1} parent=1 // pred_check
      _
    $region3: #{tpu_custom_call.1} parent=1 // pred_check_branch
      %12 = sbr.rel (0) target = $region5
    $region4: #{tpu_custom_call.1} parent=1 // pred_region
      %14 = vsyncadd [#allocation3], 0
      %s15 = sshll.u32 %s0, 4
      %s16 = int_to_ptr.hbm [resolvable:$true] %s15
      %s17 = sshll.u32 [#allocation2], 4
      %s18 = int_to_ptr.vmem [resolvable:$true] %s17
      %23 = dma.hbm_to_vmem [thread:$0]  %s16, 4096, %s18, [#allocation3], 256, 256, 16
    $region5: #{tpu_custom_call.1} parent=1 // pred_fallthru
      _
    // Predicated region
    $region6: #{tpu_custom_call.1} parent=1 // pred_check
      _
    $region7: #{tpu_custom_call.1} parent=1 // pred_check_branch
      %25 = sbr.rel (0) target = $region9
    $region8: #{tpu_custom_call.1} parent=1 // pred_region
      _
    $region9: #{tpu_custom_call.1} parent=1 // pred_fallthru
      _
    // Predicated region
    $region10: #{tpu_custom_call.1} parent=1 // pred_check
      _
    $region11: #{tpu_custom_call.1} parent=1 // pred_check_branch
      %27 = sbr.rel (0) target = $region13
    $region12: #{tpu_custom_call.1} parent=1 // pred_region
      _
    $region13: #{tpu_custom_call.1} parent=1 // pred_fallthru
      _
    // Predicated region
    $region14: #{tpu_custom_call.1} parent=1 // pred_check
      _
    $region15: #{tpu_custom_call.1} parent=1 // pred_check_branch
      %29 = sbr.rel (0) target = $region17
    $region16: #{tpu_custom_call.1} parent=1 // pred_region
      _
    $region17: #{tpu_custom_call.1} parent=1 // pred_fallthru
      _
    // Predicated region
    $region18: #{tpu_custom_call.1} parent=1 // pred_check
      _
    $region19: #{tpu_custom_call.1} parent=1 // pred_check_branch
      %31 = sbr.rel (0) target = $region21
    $region20: #{tpu_custom_call.1} parent=1 // pred_region
      %33 = dma.done [#allocation3], 4096
    $region21: #{tpu_custom_call.1} parent=1 // pred_fallthru
      _
    %v34 = vld [vmem:[%s2] sm:$0xff]
    %v35 = vld [vmem:[%s3] sm:$0xff]
    %v36 = vlaneseq
    %v37 = vand.u32 %v36, 127
    %vm38 = vcmp.lt.s32.totalorder %v37, 32
    %vm39 = vcmp.lt.s32.totalorder %v37, 64
    %41 = vset.pattern.permute.xlu0 0
    %42 = vperm.xlu0 %41, %v35
    %v43 = vpop.permute.xlu0 %42
    %45 = vset.pattern.permute.xlu0 1
    %46 = vperm.xlu0 %45, %v35
    %v47 = vpop.permute.xlu0 %46
    %v49 = vsel %vm39, %v43, %v47
    %v50 = vsel %vm38, 1.0, %v49
    %v51 = vmul.f32 %v34, %v50
    %v52 = vld [vmem:[#allocation2] sm:$0xff]
    %v53 = vld [vmem:[#allocation2 + $0x8] sm:$0xff]
    %v54 = vld [vmem:[#allocation2 + $0x10] sm:$0xff]
    %v55 = vld [vmem:[#allocation2 + $0x18] sm:$0xff]
    %v56 = vld [vmem:[#allocation2 + $0x20] sm:$0xff]
    %v57 = vld [vmem:[#allocation2 + $0x28] sm:$0xff]
    %v58 = vld [vmem:[#allocation2 + $0x30] sm:$0xff]
    %v59 = vld [vmem:[#allocation2 + $0x38] sm:$0xff]
    %v60 = vld [vmem:[#allocation2 + $0x40] sm:$0xff]
    %v61 = vld [vmem:[#allocation2 + $0x48] sm:$0xff]
    %v62 = vld [vmem:[#allocation2 + $0x50] sm:$0xff]
    %v63 = vld [vmem:[#allocation2 + $0x58] sm:$0xff]
    %v64 = vld [vmem:[#allocation2 + $0x60] sm:$0xff]
    %v65 = vld [vmem:[#allocation2 + $0x68] sm:$0xff]
    %v66 = vld [vmem:[#allocation2 + $0x70] sm:$0xff]
    %v67 = vld [vmem:[#allocation2 + $0x78] sm:$0xff]
    %v68 = vld [vmem:[#allocation2 + $0x80] sm:$0xff]
    %v69 = vld [vmem:[#allocation2 + $0x88] sm:$0xff]
    %v70 = vld [vmem:[#allocation2 + $0x90] sm:$0xff]
    %v71 = vld [vmem:[#allocation2 + $0x98] sm:$0xff]
    %v72 = vld [vmem:[#allocation2 + $0xa0] sm:$0xff]
    %v73 = vld [vmem:[#allocation2 + $0xa8] sm:$0xff]
    %v74 = vld [vmem:[#allocation2 + $0xb0] sm:$0xff]
    %v75 = vld [vmem:[#allocation2 + $0xb8] sm:$0xff]
    %v76 = vld [vmem:[#allocation2 + $0xc0] sm:$0xff]
    %v77 = vld [vmem:[#allocation2 + $0xc8] sm:$0xff]
    %v78 = vld [vmem:[#allocation2 + $0xd0] sm:$0xff]
    %v79 = vld [vmem:[#allocation2 + $0xd8] sm:$0xff]
    %v80 = vld [vmem:[#allocation2 + $0xe0] sm:$0xff]
    %v81 = vld [vmem:[#allocation2 + $0xe8] sm:$0xff]
    %v82 = vld [vmem:[#allocation2 + $0xf0] sm:$0xff]
    %v83 = vld [vmem:[#allocation2 + $0xf8] sm:$0xff]
    %v84 = vld [vmem:[%s1] sm:$0x3]
    %v86 = vperm.slane %v84, 0
    %v87 = vperm.slane %v84, 1
    %90 = vmatpush.msra.mxu0 %v82
    %91 = vmatpush.msra.mxu0 %v80
    %92 = vmatpush.msra.mxu0 %v78
    %93 = vmatpush.msra.mxu0 %v76
    %94 = vmatpush.msra.mxu0 %v74
    %95 = vmatpush.msra.mxu0 %v72
    %96 = vmatpush.msra.mxu0 %v70
    %97 = vmatpush.msra.mxu0 %v68
    %98 = vmatpush.msra.mxu0 %v66
    %99 = vmatpush.msra.mxu0 %v64
    %100 = vmatpush.msra.mxu0 %v62
    %101 = vmatpush.msra.mxu0 %v60
    %102 = vmatpush.msra.mxu0 %v58
    %103 = vmatpush.msra.mxu0 %v56
    %104 = vmatpush.msra.mxu0 %v54
    %105 = vmatpush.msra.mxu0 %v52
    %106 = vmatmul.f32.gmra.mxu0 %v51
    %v107 = vpop.f32.mrf.mxu0
    %v108 = vadd.f32 %v86, %v107
    %109 = vdwg.mxu0
    %110 = vmatpush.msra.mxu0 %v83
    %111 = vmatpush.msra.mxu0 %v81
    %112 = vmatpush.msra.mxu0 %v79
    %113 = vmatpush.msra.mxu0 %v77
    %114 = vmatpush.msra.mxu0 %v75
    %115 = vmatpush.msra.mxu0 %v73
    %116 = vmatpush.msra.mxu0 %v71
    %117 = vmatpush.msra.mxu0 %v69
    %118 = vmatpush.msra.mxu0 %v67
    %119 = vmatpush.msra.mxu0 %v65
    %120 = vmatpush.msra.mxu0 %v63
    %121 = vmatpush.msra.mxu0 %v61
    %122 = vmatpush.msra.mxu0 %v59
    %123 = vmatpush.msra.mxu0 %v57
    %124 = vmatpush.msra.mxu0 %v55
    %125 = vmatpush.msra.mxu0 %v53
    %126 = vmatmul.f32.gmra.mxu0 %v51
    %v127 = vpop.f32.mrf.mxu0
    %v128 = vadd.f32 %v87, %v127
    %129 = vdwg.mxu0
    %v130 = vxor.u32 %v108, 2147483648
    %v131 = vmul.f32 %v130, 1.442695
    %v132 = vpow.pop %v131
    %v133 = vadd.f32 %v132, 1.0
    %v134 = vrcp.pop %v133
    %v135 = vmul.f32 %v133, %v134
    %v136 = vsub.f32 1.0, %v135
    %v137 = vmul.f32 %v134, %v136
    %v138 = vadd.f32 %v134, %v137
    %vm139 = vweird.f32 %v133
    %vm140 = vweird.f32 %v134
    %vm141 = vmor %vm139, %vm140
    %v142 = vsel %vm141, %v134, %v138
    %v143 = vand.u32 2147483647, %v133
    %vm144 = vcmp.eq.f32.partialorder %v143, 8.507059e+37
    %v145 = vand.u32 %v133, 2147483648
    %v146 = vor.u32 1.1754944e-38, %v145
    %v147 = vsel %vm144, %v146, %v142
    %v148 = vmul.f32 1.0, %v147
    %v149 = vtanh.pop %v108
    %v150 = vadd.f32 %v128, 1.0
    %v151 = vmul.f32 %v150, 0.5
    %v152 = vmax.f32 %v151, 0.0
    %v153 = vmin.f32 %v152, 1.0
    %155 = vrot.lane.b32.xlu0 %v149, 64
    %v156 = vpop.permute.xlu0 %155
    %v158 = vmul.f32 %v148, %v156
    %v159 = vsub.f32 1.0, %v35
    %161 = vrot.lane.b32.xlu0 %v159, 127
    %v162 = vpop.permute.xlu0 %161
    %v164 = vmul.f32 %v159, %v162
    %165 = vrot.lane.b32.xlu0 %v35, 127
    %v166 = vpop.permute.xlu0 %165
    %v168 = vmul.f32 %v159, %v166
    %v169 = vmul.f32 %v43, %v158
    %171 = vset.pattern.permute.xlu0 0
    %172 = vperm.xlu0 %171, %v164
    %v173 = vpop.permute.xlu0 %172
    %v175 = vmul.f32 %v173, %v34
    %177 = vrot.lane.b32.xlu0 %v175, 64
    %v178 = vpop.permute.xlu0 %177
    %v180 = vadd.f32 %v169, %v178
    %182 = vrot.lane.b32.xlu0 %v34, 32
    %v183 = vpop.permute.xlu0 %182
    %v185 = vmul.f32 %v148, %v183
    %187 = vrot.lane.b32.xlu0 %v158, 96
    %v188 = vpop.permute.xlu0 %187
    %v190 = vadd.f32 %v185, %v188
    %192 = vset.pattern.permute.xlu0 0
    %193 = vperm.xlu0 %192, %v168
    %v194 = vpop.permute.xlu0 %193
    %v196 = vmul.f32 %v194, %v190
    %198 = vrot.lane.b32.xlu0 %v196, 32
    %v199 = vpop.permute.xlu0 %198
    %v201 = vadd.f32 %v180, %v199
    %v202 = vtanh.pop %v201
    %v203 = vmul.f32 %v43, %v148
    %205 = vrot.lane.b32.xlu0 %v202, 32
    %v206 = vpop.permute.xlu0 %205
    %v208 = vmul.f32 %v203, %v206
    %v209 = vadd.f32 %v208, %v175
    %v210 = vmul.f32 %v194, %v148
    %v211 = vmul.f32 %v210, %v206
    %v212 = vadd.f32 %v209, %v211
    %vm213 = vcmp.gt.f32.partialorder %v153, 0.5
    %v214 = vsel %vm213, 1, 0
    %v215 = vcvt.s32.f32 %v214
    %217 = vrot.lane.b32.xlu0 %v212, 64
    %v218 = vpop.permute.xlu0 %217
    %vm220 = vcmask 261120
    %221 = vst.msk [vmem:[#allocation5] sm:$0xff] %vm220, %v218
    %vm222 = vcmask 523520
    %223 = vst.msk [vmem:[#allocation5] sm:$0xff] %vm222, %v201
    %225 = vrot.lane.b32.xlu0 %v215, 64
    %v226 = vpop.permute.xlu0 %225
    %vm228 = vcmask 531968
    %229 = vst.msk [vmem:[#allocation5] sm:$0xff] %vm228, %v226
    // Predicated region
    $region22: #{tpu_custom_call.1} parent=1 // pred_check
      _
    $region23: #{tpu_custom_call.1} parent=1 // pred_check_branch
      %231 = sbr.rel (0) target = $region25
    $region24: #{tpu_custom_call.1} parent=1 // pred_region
      %233 = vsyncadd [#allocation4], 0
      %s235 = sshll.u32 [#allocation5], 4
      %s236 = int_to_ptr.vmem [resolvable:$true] %s235
      %s237 = sshll.u32 %s4, 4
      %s238 = int_to_ptr.hbm [resolvable:$true] %s237
      %240 = dma.vmem_to_hbm [thread:$0]  %s236, 128, %s238, [#allocation4]
    $region25: #{tpu_custom_call.1} parent=1 // pred_fallthru
      _
    // Predicated region
    $region26: #{tpu_custom_call.1} parent=1 // pred_check
      _
    $region27: #{tpu_custom_call.1} parent=1 // pred_check_branch
      %242 = sbr.rel (0) target = $region29
    $region28: #{tpu_custom_call.1} parent=1 // pred_region
      %244 = dma.done [#allocation4], 128
    $region29: #{tpu_custom_call.1} parent=1 // pred_fallthru
      _
    %245 = vsyncpa [#allocation3], 1
    %246 = vsyncpa [#allocation4], 1

</llo_original>
